<compile_context>
chip_gen: v7x
topology: tpu7x:2x2x1
jax: 0.10.0
libtpu: 0.0.40
codegen_flags: <defaults>
</compile_context>

<pallas_src>
import math

import jax
import jax.numpy as jnp
from jax.experimental import pallas as pl
from jax.experimental.pallas import tpu as pltpu

EPS_BN = 1e-5


def _round_up(a, b):
    return (a + b - 1) // b * b


# ----------------------------------------------------------------------------
# Pallas kernel: one (Cout, tp) output block of  relu((W @ x) * scale + shift)
# ----------------------------------------------------------------------------
def _conv1x1_kernel(w_ref, scale_ref, shift_ref, x_ref, o_ref):
    # w_ref:     (Cout, Cp)    bf16, VMEM-resident (same block every grid step)
    # scale_ref: (Cout, 1)     f32   eval-BN scale  gamma/sqrt(var+eps)
    # shift_ref: (Cout, 1)     f32   eval-BN shift  (b-mean)*scale + beta
    # x_ref:     (1, Cp, tp)   f32   activation tile (pixels on lanes)
    # o_ref:     (1, Cout, tp) f32
    xb = x_ref[0].astype(jnp.bfloat16)  # in-kernel cast: free VPU work, bf16 MXU feed
    acc = jnp.dot(w_ref[...], xb, preferred_element_type=jnp.float32)
    o_ref[0] = jnp.maximum(acc * scale_ref[...] + shift_ref[...], 0.0)


def _pick_pixel_tile(hw, cin_p, cout, n_batch):
    # Double-buffered f32 input + f32 output bytes per pixel column.
    per_px = 2 * 4 * (cin_p + cout)
    budget = 24 << 20                       # block working-set budget (v7x-safe)
    cap = max(128, (budget // per_px) // 128 * 128)
    tp = hw if hw <= cap else min(cap, 2048)
    # Only split when there would otherwise be a SINGLE grid tile, so both v7x
    # TensorCores get work; the extra grid step is negligible on v5e/v6e.
    if n_batch * (-(-hw // tp)) == 1 and hw >= 256:
        tp = _round_up(-(-hw // 2), 128)
    return tp


# ----------------------------------------------------------------------------
# Forward: ReLU(BN(Conv1x1(x)))  (whole thing jitted -> no extra dispatches)
# ----------------------------------------------------------------------------
@jax.jit
def conv1x1_forward(x, w_bf16, scale, shift):
    """x: (N, Cin, H, W) f32; w_bf16: (Cout, Cin) bf16 (unscaled);
    scale/shift: (Cout, 1) f32.  Returns (N, Cout, H, W) f32."""
    N, C, H, W = x.shape
    Cout, Cin = w_bf16.shape
    assert C == Cin
    HW = H * W

    # NCHW-native: free reshape in, free reshape out (no layout transposes).
    xr = x.reshape(N, C, HW)

    # Pad the contraction (channel) dim to a sublane multiple only when it is
    # misaligned (tiny-channel case); aligned real workloads pay nothing.
    Cp = _round_up(C, 8)
    if Cp != C:
        xr = jnp.pad(xr, ((0, 0), (0, Cp - C), (0, 0)))
        w_bf16 = jnp.pad(w_bf16, ((0, 0), (0, Cp - C)))

    tp = _pick_pixel_tile(HW, Cp, Cout, N)
    grid = (N, pl.cdiv(HW, tp))

    # Double-buffered x/out blocks + resident weight/scale/shift + headroom,
    # capped at 40 MiB so it is safe on v7x's 64 MiB VMEM.
    need = 2 * Cp * tp * 4 + 2 * Cout * tp * 4 + Cout * Cp * 2 + 4 * Cout * 4
    vmem_limit = int(min(max(need + (8 << 20), 16 << 20), 40 << 20))

    y = pl.pallas_call(
        _conv1x1_kernel,
        out_shape=jax.ShapeDtypeStruct((N, Cout, HW), jnp.float32),
        grid=grid,
        in_specs=[
            pl.BlockSpec((Cout, Cp), lambda n, p: (0, 0)),      # weight (resident)
            pl.BlockSpec((Cout, 1), lambda n, p: (0, 0)),       # BN scale
            pl.BlockSpec((Cout, 1), lambda n, p: (0, 0)),       # BN shift
            pl.BlockSpec((1, Cp, tp), lambda n, p: (n, 0, p)),  # activation tile
        ],
        out_specs=pl.BlockSpec((1, Cout, tp), lambda n, p: (n, 0, p)),
        compiler_params=pltpu.CompilerParams(
            dimension_semantics=("parallel", "parallel"),
            vmem_limit_bytes=vmem_limit,
        ),
    )(w_bf16, scale, shift, xr)

    return y.reshape(N, Cout, H, W)


# ----------------------------------------------------------------------------
# Parameters & one-time prep
# ----------------------------------------------------------------------------
def init_conv1x1_params(key, in_channels, out_channels):
    """nn.Conv2d(cin, cout, 1) + nn.BatchNorm2d(cout), deterministic values.
    BN running stats / affine are non-trivial so the folded path is exercised
    (eval-mode semantics, matching model.eval())."""
    kw, kb, kg, kbt, km, kv = jax.random.split(key, 6)
    bound = 1.0 / math.sqrt(in_channels)
    return {
        "w": jax.random.uniform(kw, (out_channels, in_channels), jnp.float32,
                                -bound, bound),
        "b": jax.random.uniform(kb, (out_channels,), jnp.float32, -bound, bound),
        "gamma": jax.random.uniform(kg, (out_channels,), jnp.float32, 0.5, 1.5),
        "beta": jax.random.uniform(kbt, (out_channels,), jnp.float32, -0.5, 0.5),
        "mean": jax.random.uniform(km, (out_channels,), jnp.float32, -0.5, 0.5),
        "var": jax.random.uniform(kv, (out_channels,), jnp.float32, 0.5, 1.5),
    }


def prepare_conv1x1(params):
    """One-time (build-time) prep: fold eval-mode BN into per-channel f32
    scale/shift.  The weight stays UNSCALED and is cast to bf16; the scale is
    applied in f32 in the kernel epilogue, so a large gamma/sqrt(var+eps)
    cannot overflow / lose precision in the bf16 weight."""
    scale = params["gamma"] / jnp.sqrt(params["var"] + EPS_BN)          # (Cout,)
    shift = (params["b"] - params["mean"]) * scale + params["beta"]     # (Cout,)
    return (params["w"].astype(jnp.bfloat16),
            scale.reshape(-1, 1).astype(jnp.float32),
            shift.reshape(-1, 1).astype(jnp.float32))


# ----------------------------------------------------------------------------
# Pure-JAX f32 reference (eval-mode BN) for a tolerance check vs bf16 MXU feed.
# ----------------------------------------------------------------------------
def conv1x1_reference(params, x):
    y = jnp.einsum("nchw,oc->nohw", x, params["w"]) \
        + params["b"][None, :, None, None]
    inv = params["gamma"] / jnp.sqrt(params["var"] + EPS_BN)
    y = (y - params["mean"][None, :, None, None]) * inv[None, :, None, None] \
        + params["beta"][None, :, None, None]
    return jnp.maximum(y, 0.0)


# TODO(synk): training-mode BatchNorm (batch statistics + running-stat update)
# is not implemented; this kernel implements the eval-mode (folded) forward.
# ----------------------------------------------------------------------------
if __name__ == "__main__":
    key = jax.random.PRNGKey(0)
    kx, kp = jax.random.split(key)

    in_channels, out_channels = 4, 8
    x = jax.random.normal(kx, (2, in_channels, 16, 16), jnp.float32)
    params = init_conv1x1_params(kp, in_channels, out_channels)
    w_bf16, scale, shift = prepare_conv1x1(params)

    out = conv1x1_forward(x, w_bf16, scale, shift)
    out = jax.block_until_ready(out)
    assert out.shape == (2, out_channels, 16, 16), out.shape
    assert bool(jnp.all(jnp.isfinite(out)))

    ref = conv1x1_reference(params, x)
    err = float(jnp.max(jnp.abs(out - ref)))
    tol = 5e-2 * (float(jnp.max(jnp.abs(ref))) + 1.0)   # bf16-MXU tolerance
    assert err < tol, (err, tol)

    print("KERNEL_OK")
</pallas_src>

<mosaic_0001>
module attributes {stable_mosaic.version = 11 : i64} {
  func.func @_conv1x1_kernel(%arg0: i32, %arg1: i32, %arg2: memref<8x8xbf16, #tpu.memory_space<vmem>>, %arg3: memref<8x1xf32, #tpu.memory_space<vmem>>, %arg4: memref<8x1xf32, #tpu.memory_space<vmem>>, %arg5: memref<1x8x256xf32, #tpu.memory_space<vmem>>, %arg6: memref<1x8x256xf32, #tpu.memory_space<vmem>>) attributes {dimension_semantics = [#tpu.dimension_semantics<parallel>, #tpu.dimension_semantics<parallel>], iteration_bounds = array<i64: 2, 1>, scalar_prefetch = 0 : i64, scratch_operands = 0 : i64, tpu.core_type = #tpu.core_type<tc>, window_params = [{pipeline_mode = #tpu.pipeline_mode<synchronous>, transform_indices = @transform_0, window_bounds = array<i64: 8, 8>}, {pipeline_mode = #tpu.pipeline_mode<synchronous>, transform_indices = @transform_1, window_bounds = array<i64: 8, 1>}, {pipeline_mode = #tpu.pipeline_mode<synchronous>, transform_indices = @transform_2, window_bounds = array<i64: 8, 1>}, {transform_indices = @transform_3, window_bounds = array<i64: 1, 8, 256>}, {transform_indices = @transform_4, window_bounds = array<i64: 1, 8, 256>}]} {
    %c0 = arith.constant 0 : index
    %c0_0 = arith.constant 0 : index
    %c0_1 = arith.constant 0 : index
    %0 = vector.load %arg5[%c0, %c0_0, %c0_1] : memref<1x8x256xf32, #tpu.memory_space<vmem>>, vector<1x8x256xf32>
    %1 = vector.shape_cast %0 : vector<1x8x256xf32> to vector<8x256xf32>
    %2 = arith.truncf %1 : vector<8x256xf32> to vector<8x256xbf16>
    %c0_2 = arith.constant 0 : index
    %c0_3 = arith.constant 0 : index
    %3 = vector.load %arg2[%c0_2, %c0_3] : memref<8x8xbf16, #tpu.memory_space<vmem>>, vector<8x8xbf16>
    %cst = arith.constant dense<0.000000e+00> : vector<8x256xf32>
    %4 = tpu.matmul %3, %2, %cst {dimension_numbers = #tpu.dot_dimension_numbers<[1], [0], [0], [1], [0, 0, 1, 1], [], []>} : vector<8x8xbf16>, vector<8x256xbf16>, vector<8x256xf32> -> vector<8x256xf32>
    %c0_4 = arith.constant 0 : index
    %c0_5 = arith.constant 0 : index
    %5 = vector.load %arg3[%c0_4, %c0_5] : memref<8x1xf32, #tpu.memory_space<vmem>>, vector<8x1xf32>
    %6 = vector.broadcast %5 : vector<8x1xf32> to vector<8x256xf32>
    %7 = arith.mulf %4, %6 : vector<8x256xf32>
    %c0_6 = arith.constant 0 : index
    %c0_7 = arith.constant 0 : index
    %8 = vector.load %arg4[%c0_6, %c0_7] : memref<8x1xf32, #tpu.memory_space<vmem>>, vector<8x1xf32>
    %9 = vector.broadcast %8 : vector<8x1xf32> to vector<8x256xf32>
    %10 = arith.addf %7, %9 : vector<8x256xf32>
    %cst_8 = arith.constant 0.000000e+00 : f32
    %11 = vector.broadcast %cst_8 : f32 to vector<8x256xf32>
    %12 = arith.maximumf %10, %11 : vector<8x256xf32>
    %c0_9 = arith.constant 0 : index
    %c0_10 = arith.constant 0 : index
    %c0_11 = arith.constant 0 : index
    %13 = vector.load %arg6[%c0_9, %c0_10, %c0_11] : memref<1x8x256xf32, #tpu.memory_space<vmem>>, vector<1x8x256xf32>
    %14 = vector.shape_cast %13 : vector<1x8x256xf32> to vector<8x256xf32>
    %15 = vector.shape_cast %12 : vector<8x256xf32> to vector<1x8x256xf32>
    tpu.vector_store %arg6[%c0_9, %c0_10, %c0_11], %15 {strides = array<i32>} : memref<1x8x256xf32, #tpu.memory_space<vmem>>, vector<1x8x256xf32>,
    return
  }
  func.func @transform_0(%arg0: i32, %arg1: i32) -> (i32, i32) {
    %c0_i32 = arith.constant 0 : i32
    %c0_i32_0 = arith.constant 0 : i32
    %c0_i32_1 = arith.constant 0 : i32
    return %c0_i32, %c0_i32_0 : i32, i32
  }
  func.func @transform_1(%arg0: i32, %arg1: i32) -> (i32, i32) {
    %c0_i32 = arith.constant 0 : i32
    %c0_i32_0 = arith.constant 0 : i32
    %c0_i32_1 = arith.constant 0 : i32
    return %c0_i32, %c0_i32_0 : i32, i32
  }
  func.func @transform_2(%arg0: i32, %arg1: i32) -> (i32, i32) {
    %c0_i32 = arith.constant 0 : i32
    %c0_i32_0 = arith.constant 0 : i32
    %c0_i32_1 = arith.constant 0 : i32
    return %c0_i32, %c0_i32_0 : i32, i32
  }
  func.func @transform_3(%arg0: i32, %arg1: i32) -> (i32, i32, i32) {
    %c0_i32 = arith.constant 0 : i32
    %c0_i32_0 = arith.constant 0 : i32
    return %arg0, %c0_i32, %arg1 : i32, i32, i32
  }
  func.func @transform_4(%arg0: i32, %arg1: i32) -> (i32, i32, i32) {
    %c0_i32 = arith.constant 0 : i32
    %c0_i32_0 = arith.constant 0 : i32
    return %arg0, %c0_i32, %arg1 : i32, i32, i32
  }
}

</mosaic_0001>

<llo_original>
// kernel: conv1x1_forward.1
$region0: #{conv1x1_forward.1}
  #allocation0 [shape = 'u32[]', space=smem, size = 0x4, offset = 0x4, fixed_abs, tag = 'smem constant byte address 0x4 - core index']
  #allocation1 [shape = 'u32[144,128]{1,0:T(1,128)}', space=vmem, size = 0x12000, scoped, tag = 'internal scratch']
  %s0 = inlined_call_operand.vmem [shape: bf16[8,8], index: 0, kind: input, shape index: {}]
  %s1 = inlined_call_operand.vmem [shape: f32[8,1], index: 1, kind: input, shape index: {}]
  %s2 = inlined_call_operand.vmem [shape: f32[8,1], index: 2, kind: input, shape index: {}]
  %s3 = inlined_call_operand.vmem [shape: f32[2,8,256], index: 3, kind: input, shape index: {}]
  %s4 = inlined_call_operand.vmem [shape: f32[2,8,256], index: 4, kind: output, shape index: {}]
  %s5 = sld [smem:[#allocation0]]
  $region49: #{conv1x1_forward.1} parent=0
    _
  %s7 = ssub.s32 1, %s5
  %s8 = scalar_select 0, %s7, %s5
  loop: start=0, step=1, limit=4
  $region2: #{conv1x1_forward.1} parent=0 // loop_pre_header
    _
  $region3: #{conv1x1_forward.1} parent=0 // loop_header
    %s10 = sphi 0, %s14
    %p11 = scmp.ge.s32.totalorder %s10, 4
    %s17 = sphi 0, %s29
    %s18 = sphi 0, %s25
    %s19 = sphi 0, %s17
    %s20 = sphi 0, %s18
    %s21 = sphi 0, %s19
    %s22 = sphi 0, %s20
    %s30 = sphi 0, %s30
    %s32 = sphi 0, %s30
    %s33 = sphi 0, %s32
    %s47 = sphi 0, %s33
    %s51 = sphi 0, %s51
    %s53 = sphi 0, %s51
    %s54 = sphi 0, %s53
    %s68 = sphi 0, %s54
    %s72 = sphi 0, %s72
    %s74 = sphi 0, %s72
    %s75 = sphi 0, %s74
    %s89 = sphi 0, %s75
    %s97 = sphi 0, %s99
    %s100 = sphi 0, %s97
    %s101 = sphi 0, %s100
    %s117 = sphi 0, %s101
    %s125 = sphi 0, %s127
    %s128 = sphi 0, %s125
    %s129 = sphi 0, %s128
    %s145 = sphi 0, %s129
  $region4: #{conv1x1_forward.1} parent=0 // loop_header_branch
    %13 = sbr.rel (%p11) target = $region8
  $region5: #{conv1x1_forward.1} parent=0 // loop_body
    %s15 = ssub.s32 %s10, 1
    %s16 = ssub.s32 %s10, 2
    %s23 = sadd.s32 1, %s18
    %p24 = scmp.ge.s32.totalorder %s23, 1
    %s25 = scalar_select %p24, 0, %s23
    %s26 = sadd.s32 1, %s17
    %s27 = scalar_select %p24, %s26, %s17
    %p28 = scmp.ge.s32.totalorder %s27, 2
    %s29 = scalar_select %p28, 0, %s27
    %s31 = sadd.s32 %s30, 1
    %p34 = scmp.eq.s32.totalorder %s10, 1
    %p35 = scmp.ne.s32.totalorder %s30, %s32
    %p36 = scmp.eq.s32.totalorder %s10, 0
    %p37 = por %p35, %p36
    %p38 = scmp.ne.s32.totalorder %s30, %s32
    %p39 = scmp.eq.s32.totalorder %s15, 1
    %p40 = por %p38, %p39
    %p41 = scmp.ne.s32.totalorder %s32, %s33
    %p42 = scmp.eq.s32.totalorder %s15, 0
    %p43 = por %p41, %p42
    %p44 = scmp.ne.s32.totalorder %s32, %s33
    %p45 = scmp.eq.s32.totalorder %s16, 1
    %p46 = por %p44, %p45
    %p48 = scmp.ne.s32.totalorder %s33, %s47
    %p49 = scmp.eq.s32.totalorder %s16, 0
    %p50 = por %p48, %p49
    %s52 = sadd.s32 %s51, 1
    %p55 = scmp.eq.s32.totalorder %s10, 1
    %p56 = scmp.ne.s32.totalorder %s51, %s53
    %p57 = scmp.eq.s32.totalorder %s10, 0
    %p58 = por %p56, %p57
    %p59 = scmp.ne.s32.totalorder %s51, %s53
    %p60 = scmp.eq.s32.totalorder %s15, 1
    %p61 = por %p59, %p60
    %p62 = scmp.ne.s32.totalorder %s53, %s54
    %p63 = scmp.eq.s32.totalorder %s15, 0
    %p64 = por %p62, %p63
    %p65 = scmp.ne.s32.totalorder %s53, %s54
    %p66 = scmp.eq.s32.totalorder %s16, 1
    %p67 = por %p65, %p66
    %p69 = scmp.ne.s32.totalorder %s54, %s68
    %p70 = scmp.eq.s32.totalorder %s16, 0
    %p71 = por %p69, %p70
    %s73 = sadd.s32 %s72, 1
    %p76 = scmp.eq.s32.totalorder %s10, 1
    %p77 = scmp.ne.s32.totalorder %s72, %s74
    %p78 = scmp.eq.s32.totalorder %s10, 0
    %p79 = por %p77, %p78
    %p80 = scmp.ne.s32.totalorder %s72, %s74
    %p81 = scmp.eq.s32.totalorder %s15, 1
    %p82 = por %p80, %p81
    %p83 = scmp.ne.s32.totalorder %s74, %s75
    %p84 = scmp.eq.s32.totalorder %s15, 0
    %p85 = por %p83, %p84
    %p86 = scmp.ne.s32.totalorder %s74, %s75
    %p87 = scmp.eq.s32.totalorder %s16, 1
    %p88 = por %p86, %p87
    %p90 = scmp.ne.s32.totalorder %s75, %s89
    %p91 = scmp.eq.s32.totalorder %s16, 0
    %p92 = por %p90, %p91
    %s93 = ssub.s32 %s17, %s29
    %s94 = ssub.s32 %s18, %s25
    %s95 = sor.u32 %s93, %s94
    %p96 = scmp.eq.s32.totalorder %s95, 0
    %s98 = sadd.s32 %s97, 1
    %s99 = scalar_select %p96, %s97, %s98
    %p102 = pneg %p96
    %p103 = scmp.eq.s32.totalorder %s10, 1
    %p104 = por %p102, %p103
    %p105 = scmp.ne.s32.totalorder %s97, %s100
    %p106 = scmp.eq.s32.totalorder %s10, 0
    %p107 = por %p105, %p106
    %p108 = scmp.ne.s32.totalorder %s97, %s100
    %p109 = scmp.eq.s32.totalorder %s15, 1
    %p110 = por %p108, %p109
    %p111 = scmp.ne.s32.totalorder %s100, %s101
    %p112 = scmp.eq.s32.totalorder %s15, 0
    %p113 = por %p111, %p112
    %p114 = scmp.ne.s32.totalorder %s100, %s101
    %p115 = scmp.eq.s32.totalorder %s16, 1
    %p116 = por %p114, %p115
    %p118 = scmp.ne.s32.totalorder %s101, %s117
    %p119 = scmp.eq.s32.totalorder %s16, 0
    %p120 = por %p118, %p119
    %s121 = ssub.s32 %s17, %s29
    %s122 = ssub.s32 %s18, %s25
    %s123 = sor.u32 %s121, %s122
    %p124 = scmp.eq.s32.totalorder %s123, 0
    %s126 = sadd.s32 %s125, 1
    %s127 = scalar_select %p124, %s125, %s126
    %p130 = pneg %p124
    %p131 = scmp.eq.s32.totalorder %s10, 1
    %p132 = por %p130, %p131
    %p133 = scmp.ne.s32.totalorder %s125, %s128
    %p134 = scmp.eq.s32.totalorder %s10, 0
    %p135 = por %p133, %p134
    %p136 = scmp.ne.s32.totalorder %s125, %s128
    %p137 = scmp.eq.s32.totalorder %s15, 1
    %p138 = por %p136, %p137
    %p139 = scmp.ne.s32.totalorder %s128, %s129
    %p140 = scmp.eq.s32.totalorder %s15, 0
    %p141 = por %p139, %p140
    %p142 = scmp.ne.s32.totalorder %s128, %s129
    %p143 = scmp.eq.s32.totalorder %s16, 1
    %p144 = por %p142, %p143
    %p146 = scmp.ne.s32.totalorder %s129, %s145
    %p147 = scmp.eq.s32.totalorder %s16, 0
    %p148 = por %p146, %p147
    %p149 = scmp.le.s32.totalorder 1, %s10
    %p150 = scmp.lt.s32.totalorder %s10, 3
    %p151 = pnand %p149, %p150
    %p152 = pneg %p151
    // Predicated region
    $region9: #{conv1x1_forward.1} parent=5 // pred_check
      _
    $region10: #{conv1x1_forward.1} parent=5 // pred_check_branch
      %154 = sbr.rel (%p151) target = $region12
    $region11: #{conv1x1_forward.1} parent=5 // pred_region
      %s155 = ssub.s32 %s10, 1
      // Predicated region
      $region13: #{conv1x1_forward.1} parent=11 // pred_check
        %p156 = pneg %p43
      $region14: #{conv1x1_forward.1} parent=11 // pred_check_branch
        %158 = sbr.rel (%p156) target = $region16
      $region15: #{conv1x1_forward.1} parent=11 // pred_region
        _
      $region16: #{conv1x1_forward.1} parent=11 // pred_fallthru
        _
      // Predicated region
      $region17: #{conv1x1_forward.1} parent=11 // pred_check
        %p159 = pneg %p64
      $region18: #{conv1x1_forward.1} parent=11 // pred_check_branch
        %161 = sbr.rel (%p159) target = $region20
      $region19: #{conv1x1_forward.1} parent=11 // pred_region
        _
      $region20: #{conv1x1_forward.1} parent=11 // pred_fallthru
        _
      // Predicated region
      $region21: #{conv1x1_forward.1} parent=11 // pred_check
        %p162 = pneg %p85
      $region22: #{conv1x1_forward.1} parent=11 // pred_check_branch
        %164 = sbr.rel (%p162) target = $region24
      $region23: #{conv1x1_forward.1} parent=11 // pred_region
        _
      $region24: #{conv1x1_forward.1} parent=11 // pred_fallthru
        _
    $region12: #{conv1x1_forward.1} parent=5 // pred_fallthru
      _
    %p165 = scmp.lt.s32.totalorder %s10, 2
    // Predicated region
    $region25: #{conv1x1_forward.1} parent=5 // pred_check
      %p166 = pneg %p165
    $region26: #{conv1x1_forward.1} parent=5 // pred_check_branch
      %168 = sbr.rel (%p166) target = $region28
    $region27: #{conv1x1_forward.1} parent=5 // pred_region
      // Predicated region
      $region29: #{conv1x1_forward.1} parent=27 // pred_check
        %p169 = pneg %p107
      $region30: #{conv1x1_forward.1} parent=27 // pred_check_branch
        %171 = sbr.rel (%p169) target = $region32
      $region31: #{conv1x1_forward.1} parent=27 // pred_region
        %s172 = smul.u32 2, %s18
        %p173 = scmp.lt.s32.totalorder %s17, 1
        %s174 = scalar_select %p173, %s17, 1
        %p175 = scmp.lt.s32.totalorder %s172, 1
        %s176 = scalar_select %p175, %s172, 1
        %s177 = smul.addr %s174, 2
        %s178 = sadd.s32 %s176, %s177
        %s179 = smul.addr %s178, 8
        %s180 = scalar_lea.vmem %s3, %s179
        %s181 = smul.u32 2, %s18
      $region32: #{conv1x1_forward.1} parent=27 // pred_fallthru
        _
    $region28: #{conv1x1_forward.1} parent=5 // pred_fallthru
      _
    %p182 = scmp.le.s32.totalorder 1, %s10
    %p183 = scmp.lt.s32.totalorder %s10, 3
    %p184 = pnand %p182, %p183
    %p185 = pneg %p184
    // Predicated region
    $region33: #{conv1x1_forward.1} parent=5 // pred_check
      _
    $region34: #{conv1x1_forward.1} parent=5 // pred_check_branch
      %187 = sbr.rel (%p184) target = $region36
    $region35: #{conv1x1_forward.1} parent=5 // pred_region
      %s188 = ssub.s32 %s10, 1
      %p189 = pneg %p43
      %p190 = pneg %p40
      %p191 = pneg %p64
      %p192 = pneg %p61
      %p193 = pneg %p85
      %p194 = pneg %p82
      %s195 = smul.u32 2, %s20
      %p196 = scmp.lt.s32.totalorder %s19, 1
      %s197 = scalar_select %p196, %s19, 1
      %p198 = scmp.lt.s32.totalorder %s195, 1
      %s199 = scalar_select %p198, %s195, 1
      %s200 = smul.addr %s197, 2
      %s201 = sadd.s32 %s199, %s200
      %s202 = smul.addr %s201, 8
      %s203 = scalar_lea.vmem %s3, %s202
      %p204 = pneg %p113
      %p205 = pneg %p110
      %p206 = pneg %p141
      %p207 = pneg %p138
      %s208 = smul.u32 2, %s20
      %p209 = scmp.lt.s32.totalorder %s19, 1
      %s210 = scalar_select %p209, %s19, 1
      %p211 = scmp.lt.s32.totalorder %s208, 1
      %s212 = scalar_select %p211, %s208, 1
      %s213 = smul.addr %s210, 2
      %s214 = sadd.s32 %s212, %s213
      %s215 = smul.addr %s214, 8
      %s216 = scalar_lea.vmem %s4, %s215
      %s217 = smul.u32 2, %s20
      %p218 = scmp.lt.s32.totalorder %s19, 1
      %s219 = scalar_select %p218, %s19, 1
      %p220 = scmp.lt.s32.totalorder %s217, 1
      %s221 = scalar_select %p220, %s217, 1
      %s222 = smul.addr %s219, 2
      %s223 = sadd.s32 %s221, %s222
      %s224 = smul.addr %s223, 8
      %s225 = scalar_lea.vmem %s3, %s224
      %s226 = smul.u32 2, %s20
      %s227 = smul.u32 2, %s20
      %p228 = scmp.lt.s32.totalorder %s19, 1
      %s229 = scalar_select %p228, %s19, 1
      %p230 = scmp.lt.s32.totalorder %s227, 1
      %s231 = scalar_select %p230, %s227, 1
      %s232 = smul.addr %s229, 2
      %s233 = sadd.s32 %s231, %s232
      %s234 = smul.addr %s233, 8
      %s235 = scalar_lea.vmem %s4, %s234
      %s236 = smul.u32 2, %s20
      %v238 = vld [vmem:[%s225] sm:$0xff]
      %v239 = vld [vmem:[%s225 + $0x8] sm:$0xff]
      %v240 = vpack.c.bf16 %v238, %v238
      %v241 = vpack.c.bf16 %v239, %v239
      %v242 = vld [vmem:[%s0] sm:$0xf]
      %vm243 = vcmask 64512
      %v245 = vsel %vm243, %v242, 0
      %vm247 = vcmask 1043456
      %v249 = vsel %vm247, %v240, 0
      %v252 = vsel %vm247, %v241, 0
      %254 = vmatprep.subr.bf16.mxu0 %v252
      %255 = vmatpush1.bf16.msra.mxu0 %v249
      %256 = vmatprep.subr.bf16.mxu0 0
      %257 = vmatpush1.bf16.msra.mxu0 0
      %258 = vmatprep.subr.bf16.mxu0 0
      %259 = vmatpush1.bf16.msra.mxu0 0
      %260 = vmatprep.subr.bf16.mxu0 0
      %261 = vmatpush1.bf16.msra.mxu0 0
      %262 = vmatprep.subr.bf16.mxu0 0
      %263 = vmatpush1.bf16.msra.mxu0 0
      %264 = vmatprep.subr.bf16.mxu0 0
      %265 = vmatpush1.bf16.msra.mxu0 0
      %266 = vmatprep.subr.bf16.mxu0 0
      %267 = vmatpush1.bf16.msra.mxu0 0
      %268 = vmatprep.subr.bf16.mxu0 0
      %269 = vmatpush1.bf16.msra.mxu0 0
      %270 = vmatprep.subr.bf16.mxu0 0
      %271 = vmatpush1.bf16.msra.mxu0 0
      %272 = vmatprep.subr.bf16.mxu0 0
      %273 = vmatpush1.bf16.msra.mxu0 0
      %274 = vmatprep.subr.bf16.mxu0 0
      %275 = vmatpush1.bf16.msra.mxu0 0
      %276 = vmatprep.subr.bf16.mxu0 0
      %277 = vmatpush1.bf16.msra.mxu0 0
      %278 = vmatprep.subr.bf16.mxu0 0
      %279 = vmatpush1.bf16.msra.mxu0 0
      %280 = vmatprep.subr.bf16.mxu0 0
      %281 = vmatpush1.bf16.msra.mxu0 0
      %282 = vmatprep.subr.bf16.mxu0 0
      %283 = vmatpush1.bf16.msra.mxu0 0
      %284 = vmatprep.subr.bf16.mxu0 0
      %285 = vmatpush1.bf16.msra.mxu0 0
      %286 = vmatprep.mubr.bf16.mxu0 0
      %287 = vmatmul.mubr.bf16.gmra.mrb[0].mxu0 %v245
      %v288 = vpop.f32.mrb[0].mxu0
      %v289 = vadd.f32 0.0, %v288
      %v290 = vpop.f32.mrb[0].mxu0
      %v291 = vadd.f32 0.0, %v290
      %v292 = vpop.f32.mrb[0].mxu0
      %v293 = vpop.f32.mrb[0].mxu0
      %294 = vdwg.mxu0
      %v295 = vld [vmem:[%s1] sm:$0xff]
      %297 = vset.pattern.permute.xlu0 0
      %298 = vperm.xlu0 %297, %v295
      %v299 = vpop.permute.xlu0 %298
      %v301 = vmul.f32 %v289, %v299
      %v302 = vmul.f32 %v291, %v299
      %v303 = vld [vmem:[%s2] sm:$0xff]
      %305 = vset.pattern.permute.xlu0 0
      %306 = vperm.xlu0 %305, %v303
      %v307 = vpop.permute.xlu0 %306
      %v309 = vadd.f32 %v301, %v307
      %v310 = vadd.f32 %v302, %v307
      %v311 = vmax.f32 %v309, 0.0
      %v312 = vmax.f32 %v310, 0.0
      %313 = vst [vmem:[%s235] sm:$0xff] %v311
      %314 = vst [vmem:[%s235 + $0x8] sm:$0xff] %v312
      %s315 = smul.u32 2, %s20
      %p316 = scmp.lt.s32.totalorder %s19, 1
      %s317 = scalar_select %p316, %s19, 1
      %p318 = scmp.lt.s32.totalorder %s315, 1
      %s319 = scalar_select %p318, %s315, 1
      %s320 = smul.addr %s317, 2
      %s321 = sadd.s32 %s319, %s320
      %s322 = smul.addr %s321, 8
      %s323 = scalar_lea.vmem %s4, %s322
      // Predicated region
      $region37: #{conv1x1_forward.1} parent=35 // pred_check
        %p324 = pneg %p138
      $region38: #{conv1x1_forward.1} parent=35 // pred_check_branch
        %326 = sbr.rel (%p324) target = $region40
      $region39: #{conv1x1_forward.1} parent=35 // pred_region
        %s327 = smul.u32 2, %s20
      $region40: #{conv1x1_forward.1} parent=35 // pred_fallthru
        _
    $region36: #{conv1x1_forward.1} parent=5 // pred_fallthru
      _
    %p328 = scmp.le.s32.totalorder 2, %s10
    // Predicated region
    $region41: #{conv1x1_forward.1} parent=5 // pred_check
      %p329 = pneg %p328
    $region42: #{conv1x1_forward.1} parent=5 // pred_check_branch
      %331 = sbr.rel (%p329) target = $region44
    $region43: #{conv1x1_forward.1} parent=5 // pred_region
      %s332 = ssub.s32 %s10, 2
      // Predicated region
      $region45: #{conv1x1_forward.1} parent=43 // pred_check
        %p333 = pneg %p144
      $region46: #{conv1x1_forward.1} parent=43 // pred_check_branch
        %335 = sbr.rel (%p333) target = $region48
      $region47: #{conv1x1_forward.1} parent=43 // pred_region
        %s336 = smul.u32 2, %s22
        %p337 = scmp.lt.s32.totalorder %s21, 1
        %s338 = scalar_select %p337, %s21, 1
        %p339 = scmp.lt.s32.totalorder %s336, 1
        %s340 = scalar_select %p339, %s336, 1
        %s341 = smul.addr %s338, 2
        %s342 = sadd.s32 %s340, %s341
        %s343 = smul.addr %s342, 8
        %s344 = scalar_lea.vmem %s4, %s343
      $region48: #{conv1x1_forward.1} parent=43 // pred_fallthru
        _
    $region44: #{conv1x1_forward.1} parent=5 // pred_fallthru
      _
  $region6: #{conv1x1_forward.1} parent=0 // loop_footer
    %s14 = sadd.s32 1, %s10
  $region7: #{conv1x1_forward.1} parent=0 // loop_footer_branch
    %9 = sbr.rel target = $region3
  $region8: #{conv1x1_forward.1} parent=0 // loop_exit
    _

</llo_original>
